<compile_context>
chip_gen: v6e
topology: v6e:2x2x1
jax: 0.10.0
libtpu: 0.0.40
codegen_flags: <defaults>
</compile_context>

<pallas_src>
import jax
import jax.numpy as jnp
from jax.experimental import pallas as pl
from jax.experimental.pallas import tpu as pltpu


def _rainbow_loss_kernel(pa_ref, ta_ref, pn_ref, tn_ref, nf_ref, nfc_ref,
                         adj_sum_ref, node_sum_ref, flag_sum_ref):
    """One (batch-tile, row-tile) grid step.

    Inputs (VMEM blocks):
      pa_ref, ta_ref : [Bt, Rt, N]  pred / target adjacency rows
      pn_ref, tn_ref : [Bt, N]      pred / target node values
      nf_ref         : [Bt, N]      node flags, lane layout (node term + count)
      nfc_ref        : [Bt, N, 1]   node flags, sublane layout (MXU rhs + row mask)
    Outputs (resident across the row axis; block index depends only on the batch tile):
      adj_sum_ref    : [Bt, 1]  sum_{i,j} (pa-ta)^2 * nf_i * nf_j
      node_sum_ref   : [Bt, 1]  sum_i     (pn-tn)^2 * nf_i
      flag_sum_ref   : [Bt, 1]  sum_i nf_i
    """
    r = pl.program_id(1)
    rt = pa_ref.shape[1]          # rows handled this step
    n = pa_ref.shape[2]           # full adjacency width

    nf = nf_ref[...].astype(jnp.float32)                                      # [Bt, N]
    nfc = nfc_ref[...].astype(jnp.float32)                                    # [Bt, N, 1]

    # TODO(synk): for bf16 inputs a single widening cast (subtract in bf16) trims one VPU
    # op/elem on v6e/v7x; kept as upcast-then-subtract for identical numerics on v5e.
    da = pa_ref[...].astype(jnp.float32) - ta_ref[...].astype(jnp.float32)    # [Bt, Rt, N]
    sq = da * da

    # Column-flag mask folded into an MXU contraction over the lane/N axis (the MXU is
    # otherwise idle here); replaces the VPU mask-multiply + XLU lane reduction.
    row = jnp.einsum('brn,bnk->brk', sq, nfc,
                     preferred_element_type=jnp.float32)                      # [Bt, Rt, 1]

    if rt == n:
        nf_rows = nfc                           # full rows: row flags == column flags
    else:
        start = pl.multiple_of(r * rt, 8)       # Rt is a multiple of 8 in the tiled path
        nf_rows = nfc_ref[:, pl.ds(start, rt), :].astype(jnp.float32)         # [Bt, Rt, 1]
    partial = jnp.sum(row * nf_rows, axis=1)                                  # [Bt, 1]

    @pl.when(r == 0)
    def _():
        # init adjacency accumulator; node term and flag count computed once per batch tile
        adj_sum_ref[...] = jnp.zeros_like(adj_sum_ref)
        dn = pn_ref[...].astype(jnp.float32) - tn_ref[...].astype(jnp.float32)
        node_sum_ref[...] = jnp.sum(dn * dn * nf, axis=1, keepdims=True)
        flag_sum_ref[...] = jnp.sum(nf, axis=1, keepdims=True)

    adj_sum_ref[...] = adj_sum_ref[...] + partial


def _vmem_capacity_bytes():
    """Per-TensorCore VMEM capacity (generation-aware tiling); conservative fallback."""
    try:
        info = pltpu.get_tpu_info()
        for attr in ("vmem_capacity_bytes", "vmem_bytes", "vmem_size_bytes"):
            cap = getattr(info, attr, None)
            if cap:
                return int(cap)
    except Exception:
        pass
    return 64 * 1024 * 1024   # v7x per-TC size; safe lower bound for v5e/v6e too


def _legal_tiles(total):
    # A block dim on a (second-)minor axis must either equal the full dim or be a
    # multiple of 8 (sublane granularity).  Enumerate divisors satisfying that.
    return [d for d in range(1, total + 1) if total % d == 0 and (d == total or d % 8 == 0)]


def _choose_tiles(B, N, itemsize, budget_bytes):
    """Pick (Bt, Rt).  Preference order:
       1) Rt = N (contiguous adjacency DMA, grid[1] == 1) with the largest Bt that fits the
          budget while keeping >= 2 programs on the parallel batch axis (v7x megacore).
       2) Row-tile: smallest preferred Bt, largest Rt fitting the budget.
       3) Smallest legal block (caller scales vmem_limit accordingly)."""
    bt_cands = sorted(_legal_tiles(B))
    rt_cands = sorted(_legal_tiles(N))
    if B < 16:
        bt_pref = bt_cands                                   # tiny batch: 1 program is fine
    else:
        bt_pref = [bt for bt in bt_cands if B // bt >= 2] or bt_cands

    def blk(bt, rt):
        return bt * rt * N * itemsize

    full = [bt for bt in bt_pref if blk(bt, N) <= budget_bytes]
    if full:
        return max(full), N
    bt = min(bt_pref)
    fitting = [rt for rt in rt_cands if blk(bt, rt) <= budget_bytes]
    if fitting:
        return bt, max(fitting)
    return bt, min(rt_cands)


def _run_rainbow_kernel(pred_adj, target_adj, pred_node, target_node, node_flags,
                        *, block_budget_bytes=None):
    """Per-batch masked squared-error sums.

    Returns (adj_sum, node_sum, flag_sum), each [B, 1] float32.
    loss_weight is NOT applied here (it is a per-batch constant; applied in the glue).
    """
    B, N, _ = pred_adj.shape
    itemsize = pred_adj.dtype.itemsize
    vmem_cap = _vmem_capacity_bytes()
    if block_budget_bytes is None:
        # ~8 MiB blocks on 128-MiB VMEM chips (v5e/v6e), ~4 MiB on v7x's 64-MiB TensorCores.
        block_budget_bytes = max(1 << 20, min(8 << 20, vmem_cap // 16))

    Bt, Rt = _choose_tiles(B, N, itemsize, block_budget_bytes)
    grid = (B // Bt, N // Rt)
    block_bytes = Bt * Rt * N * itemsize
    # Double-buffered pred/target adjacency blocks are the working set; fail loudly rather
    # than silently exceeding physical VMEM (review correctness concern on the fallback path).
    if 5 * block_bytes > vmem_cap:
        raise ValueError(
            f"adjacency tile ({block_bytes} B) too large for VMEM ({vmem_cap} B); "
            f"shape B={B}, N={N} is not supported by this tiling")
    vmem_limit = int(min(vmem_cap, max(vmem_cap // 2, 6 * block_bytes)))

    nf_col = node_flags.reshape(B, N, 1)   # sublane-layout flags: MXU rhs + row mask source

    out_spec = pl.BlockSpec((Bt, 1), lambda b, r: (b, 0))
    return pl.pallas_call(
        _rainbow_loss_kernel,
        grid=grid,
        in_specs=[
            pl.BlockSpec((Bt, Rt, N), lambda b, r: (b, r, 0)),   # pred_adj
            pl.BlockSpec((Bt, Rt, N), lambda b, r: (b, r, 0)),   # target_adj
            pl.BlockSpec((Bt, N), lambda b, r: (b, 0)),          # pred_node
            pl.BlockSpec((Bt, N), lambda b, r: (b, 0)),          # target_node
            pl.BlockSpec((Bt, N), lambda b, r: (b, 0)),          # node_flags (lane layout)
            pl.BlockSpec((Bt, N, 1), lambda b, r: (b, 0, 0)),    # node_flags (sublane layout)
        ],
        out_specs=(out_spec, out_spec, out_spec),
        out_shape=(
            jax.ShapeDtypeStruct((B, 1), jnp.float32),
            jax.ShapeDtypeStruct((B, 1), jnp.float32),
            jax.ShapeDtypeStruct((B, 1), jnp.float32),
        ),
        compiler_params=pltpu.CompilerParams(
            dimension_semantics=("parallel", "arbitrary"),
            vmem_limit_bytes=vmem_limit,
        ),
    )(pred_adj, target_adj, pred_node, target_node, node_flags, nf_col)


class NodeAdjRainbowLoss:
    """JAX/Pallas port of the PyTorch NodeAdjRainbowLoss forward
    ('diffusion'/'edm' objective, 3-D adjacency [B,N,N], 2-D nodes / node_flags [B,N])."""

    def __init__(self, edge_loss_weight, node_loss_weight, objective, flag_reweight=False):
        assert objective in ['score', 'diffusion', 'edm'], \
            'Loss mode {:s} is not supported!'.format(objective)
        self.edge_loss_weight = float(edge_loss_weight)
        self.node_loss_weight = float(node_loss_weight)
        self.objective = objective
        # Accepted but unused in forward — matches the reference (reweight_coef is always None).
        self.flag_reweight = flag_reweight

    def __call__(self, net_pred_a, net_pred_x, net_target_a, net_target_x, net_cond,
                 adjs_perturbed=None, adjs_gt=None, x_perturbed=None, x_gt=None,
                 node_flags=None, loss_weight=None, cond_val=None,
                 flag_matching=False, reduction='mean'):
        if flag_matching:
            raise ValueError('Graph matching is not supported for node-adj loss!')
        if self.objective == 'score':
            raise NotImplementedError   # matches the reference
        if net_pred_a.ndim != 3 or node_flags.ndim != 2:
            # TODO(synk): 4-D [B,C,N,N] adjacency / 3-D node_flags variants are not ported.
            raise NotImplementedError

        if loss_weight is None:
            loss_weight = jnp.ones_like(net_cond).astype(jnp.float32)
        lw = loss_weight.reshape(-1).astype(jnp.float32)              # [B]

        adj_sum, node_sum, flag_sum = _run_rainbow_kernel(
            net_pred_a, net_target_a, net_pred_x, net_target_x, node_flags)

        # Per-batch loss_weight applied to the reduced sums (identical math).
        adj_sum = adj_sum[:, 0] * lw                                  # [B]
        node_sum = node_sum[:, 0] * lw                                # [B]
        num_adj_entries = flag_sum[:, 0] ** 2                         # [B]
        num_node_entries = flag_sum[:, 0]                             # [B]

        if reduction == 'mean':
            # Exactly mirrors the reference (including its quirks): GLOBAL sum divided by
            # per-batch counts ([B]-shaped result) and edge_loss_weight applied to BOTH terms.
            square_loss_adj = jnp.sum(adj_sum) / num_adj_entries * self.edge_loss_weight
            square_loss_node = jnp.sum(node_sum) / num_node_entries * self.edge_loss_weight
        elif reduction is None or reduction == 'none':
            square_loss_adj = adj_sum / num_adj_entries * self.edge_loss_weight
            square_loss_node = node_sum / num_node_entries * self.node_loss_weight
        else:
            raise NotImplementedError
        return square_loss_adj, square_loss_node


if __name__ == "__main__":
    # ---------------- test 1: tiny f32 case through the full module ----------------
    B, N = 2, 16
    key = jax.random.PRNGKey(0)
    k1, k2, k3, k4, k5, k6 = jax.random.split(key, 6)

    pred_adj = jax.random.normal(k1, (B, N, N), jnp.float32)
    target_adj = jax.random.normal(k2, (B, N, N), jnp.float32)
    pred_node = jax.random.normal(k3, (B, N), jnp.float32)
    target_node = jax.random.normal(k4, (B, N), jnp.float32)
    net_cond = jax.random.uniform(k5, (B,), jnp.float32)
    node_flags = (jax.random.uniform(k6, (B, N)) > 0.3).astype(jnp.float32)
    node_flags = node_flags.at[:, 0].set(1.0)   # at least one valid node per graph

    edge_w, node_w = 2.0, 0.5
    loss_fn = NodeAdjRainbowLoss(edge_w, node_w, objective='diffusion')

    loss_adj, loss_node = loss_fn(
        pred_adj, pred_node, target_adj, target_node, net_cond,
        node_flags=node_flags, loss_weight=None, reduction='mean')
    loss_adj_n, loss_node_n = loss_fn(
        pred_adj, pred_node, target_adj, target_node, net_cond,
        node_flags=node_flags, loss_weight=None, reduction='none')
    loss_adj, loss_node, loss_adj_n, loss_node_n = jax.block_until_ready(
        (loss_adj, loss_node, loss_adj_n, loss_node_n))

    # pure-JAX reference (mirrors the PyTorch forward)
    lw = jnp.ones((B,), jnp.float32)
    sq_a = (pred_adj - target_adj) ** 2 * lw[:, None, None]
    sq_a = sq_a * node_flags[:, :, None] * node_flags[:, None, :]
    sq_n = (pred_node - target_node) ** 2 * lw[:, None] * node_flags
    n_adj = node_flags.sum(-1) ** 2
    n_node = node_flags.sum(-1)
    ref_adj = sq_a.sum() / n_adj * edge_w
    ref_node = sq_n.sum() / n_node * edge_w          # reference applies edge weight here too
    ref_adj_n = sq_a.sum((-1, -2)) / n_adj * edge_w
    ref_node_n = sq_n.sum(-1) / n_node * node_w

    assert loss_adj.shape == (B,) and loss_node.shape == (B,)
    assert jnp.allclose(loss_adj, ref_adj, rtol=1e-4, atol=1e-4)
    assert jnp.allclose(loss_node, ref_node, rtol=1e-4, atol=1e-4)
    assert jnp.allclose(loss_adj_n, ref_adj_n, rtol=1e-4, atol=1e-4)
    assert jnp.allclose(loss_node_n, ref_node_n, rtol=1e-4, atol=1e-4)

    # ------------- tests 2/3: bf16 inputs, full-rows path and forced row-tiled path -------------
    B2, N2 = 16, 128
    kk = jax.random.split(jax.random.PRNGKey(1), 5)
    pa = jax.random.normal(kk[0], (B2, N2, N2), jnp.bfloat16)
    ta = jax.random.normal(kk[1], (B2, N2, N2), jnp.bfloat16)
    pn = jax.random.normal(kk[2], (B2, N2), jnp.bfloat16)
    tn = jax.random.normal(kk[3], (B2, N2), jnp.bfloat16)
    nf2 = (jax.random.uniform(kk[4], (B2, N2)) > 0.3).astype(jnp.float32)
    nf2 = nf2.at[:, 0].set(1.0)

    pa32, ta32 = pa.astype(jnp.float32), ta.astype(jnp.float32)
    pn32, tn32 = pn.astype(jnp.float32), tn.astype(jnp.float32)
    ref_adj_sum = ((pa32 - ta32) ** 2 * nf2[:, :, None] * nf2[:, None, :]).sum((-1, -2))
    ref_node_sum = ((pn32 - tn32) ** 2 * nf2).sum(-1)
    ref_flag_sum = nf2.sum(-1)

    # test 2: default (generation-aware) budget -> full rows, grid=(2, 1), Rt == N branch.
    adj_s, node_s, flag_s = _run_rainbow_kernel(pa, ta, pn, tn, nf2)
    adj_s, node_s, flag_s = jax.block_until_ready((adj_s, node_s, flag_s))
    assert jnp.allclose(adj_s[:, 0], ref_adj_sum, rtol=1e-4, atol=1e-2)
    assert jnp.allclose(node_s[:, 0], ref_node_sum, rtol=1e-4, atol=1e-3)
    assert jnp.allclose(flag_s[:, 0], ref_flag_sum, rtol=1e-6, atol=1e-6)

    # test 3: 32 KiB block budget -> Bt=8, Rt=16, grid=(2, 8): exercises the accumulator
    # path and the in-kernel row-flag slice.
    adj_t, node_t, flag_t = _run_rainbow_kernel(
        pa, ta, pn, tn, nf2, block_budget_bytes=32 * 1024)
    adj_t, node_t, flag_t = jax.block_until_ready((adj_t, node_t, flag_t))
    assert jnp.allclose(adj_t[:, 0], ref_adj_sum, rtol=1e-4, atol=1e-2)
    assert jnp.allclose(node_t[:, 0], ref_node_sum, rtol=1e-4, atol=1e-3)
    assert jnp.allclose(flag_t[:, 0], ref_flag_sum, rtol=1e-6, atol=1e-6)

    print("KERNEL_OK")
</pallas_src>

<mosaic_0001>
module attributes {stable_mosaic.version = 11 : i64} {
  func.func @_rainbow_loss_kernel(%arg0: i32, %arg1: i32, %arg2: memref<2x16x16xf32, #tpu.memory_space<vmem>>, %arg3: memref<2x16x16xf32, #tpu.memory_space<vmem>>, %arg4: memref<2x16xf32, #tpu.memory_space<vmem>>, %arg5: memref<2x16xf32, #tpu.memory_space<vmem>>, %arg6: memref<2x16xf32, #tpu.memory_space<vmem>>, %arg7: memref<2x16x1xf32, #tpu.memory_space<vmem>>, %arg8: memref<2x1xf32, #tpu.memory_space<vmem>>, %arg9: memref<2x1xf32, #tpu.memory_space<vmem>>, %arg10: memref<2x1xf32, #tpu.memory_space<vmem>>) attributes {dimension_semantics = [#tpu.dimension_semantics<parallel>, #tpu.dimension_semantics<arbitrary>], iteration_bounds = array<i64: 1, 1>, scalar_prefetch = 0 : i64, scratch_operands = 0 : i64, tpu.core_type = #tpu.core_type<tc>, window_params = [{transform_indices = @transform_0, window_bounds = array<i64: 2, 16, 16>}, {transform_indices = @transform_1, window_bounds = array<i64: 2, 16, 16>}, {transform_indices = @transform_2, window_bounds = array<i64: 2, 16>}, {transform_indices = @transform_3, window_bounds = array<i64: 2, 16>}, {transform_indices = @transform_4, window_bounds = array<i64: 2, 16>}, {transform_indices = @transform_5, window_bounds = array<i64: 2, 16, 1>}, {transform_indices = @transform_6, window_bounds = array<i64: 2, 1>}, {transform_indices = @transform_7, window_bounds = array<i64: 2, 1>}, {transform_indices = @transform_8, window_bounds = array<i64: 2, 1>}]} {
    %c0 = arith.constant 0 : index
    %c0_0 = arith.constant 0 : index
    %0 = vector.load %arg6[%c0, %c0_0] : memref<2x16xf32, #tpu.memory_space<vmem>>, vector<2x16xf32>
    %c0_1 = arith.constant 0 : index
    %c0_2 = arith.constant 0 : index
    %c0_3 = arith.constant 0 : index
    %1 = vector.load %arg7[%c0_1, %c0_2, %c0_3] : memref<2x16x1xf32, #tpu.memory_space<vmem>>, vector<2x16x1xf32>
    %c0_4 = arith.constant 0 : index
    %c0_5 = arith.constant 0 : index
    %c0_6 = arith.constant 0 : index
    %2 = vector.load %arg2[%c0_4, %c0_5, %c0_6] : memref<2x16x16xf32, #tpu.memory_space<vmem>>, vector<2x16x16xf32>
    %c0_7 = arith.constant 0 : index
    %c0_8 = arith.constant 0 : index
    %c0_9 = arith.constant 0 : index
    %3 = vector.load %arg3[%c0_7, %c0_8, %c0_9] : memref<2x16x16xf32, #tpu.memory_space<vmem>>, vector<2x16x16xf32>
    %4 = arith.subf %2, %3 : vector<2x16x16xf32>
    %5 = arith.mulf %4, %4 : vector<2x16x16xf32>
    "tpu.trace_start"() <{level = 10 : i32, message = "brn,bnk->brk"}> : () -> ()
    %cst = arith.constant dense<0.000000e+00> : vector<2x16x1xf32>
    %6 = tpu.matmul %5, %1, %cst {dimension_numbers = #tpu.dot_dimension_numbers<[2], [1], [1], [2], [0, 0, 0, 1, 1, 2], [0], [0]>} : vector<2x16x16xf32>, vector<2x16x1xf32>, vector<2x16x1xf32> -> vector<2x16x1xf32>
    "tpu.trace_stop"() : () -> ()
    %7 = arith.mulf %6, %1 : vector<2x16x1xf32>
    %cst_10 = arith.constant dense<0.000000e+00> : vector<2x1xf32>
    %8 = vector.multi_reduction <add>, %7, %cst_10 [1] : vector<2x16x1xf32> to vector<2x1xf32>
    %c0_i32 = arith.constant 0 : i32
    %9 = arith.cmpi eq, %arg1, %c0_i32 : i32
    %10 = arith.extui %9 : i1 to i32
    %c0_i32_11 = arith.constant 0 : i32
    %11 = arith.cmpi ne, %10, %c0_i32_11 : i32
    scf.if %11 {
      %cst_16 = arith.constant 0.000000e+00 : f32
      %15 = vector.broadcast %cst_16 : f32 to vector<2x1xf32>
      %c0_17 = arith.constant 0 : index
      %c0_18 = arith.constant 0 : index
      %16 = vector.load %arg8[%c0_17, %c0_18] : memref<2x1xf32, #tpu.memory_space<vmem>>, vector<2x1xf32>
      tpu.vector_store %arg8[%c0_17, %c0_18], %15 {strides = array<i32>} : memref<2x1xf32, #tpu.memory_space<vmem>>, vector<2x1xf32>,
      %c0_19 = arith.constant 0 : index
      %c0_20 = arith.constant 0 : index
      %17 = vector.load %arg4[%c0_19, %c0_20] : memref<2x16xf32, #tpu.memory_space<vmem>>, vector<2x16xf32>
      %c0_21 = arith.constant 0 : index
      %c0_22 = arith.constant 0 : index
      %18 = vector.load %arg5[%c0_21, %c0_22] : memref<2x16xf32, #tpu.memory_space<vmem>>, vector<2x16xf32>
      %19 = arith.subf %17, %18 : vector<2x16xf32>
      %20 = arith.mulf %19, %19 : vector<2x16xf32>
      %21 = arith.mulf %20, %0 : vector<2x16xf32>
      %cst_23 = arith.constant dense<0.000000e+00> : vector<2xf32>
      %22 = vector.multi_reduction <add>, %21, %cst_23 [1] : vector<2x16xf32> to vector<2xf32>
      %23 = vector.shape_cast %22 : vector<2xf32> to vector<2x1xf32>
      %c0_24 = arith.constant 0 : index
      %c0_25 = arith.constant 0 : index
      %24 = vector.load %arg9[%c0_24, %c0_25] : memref<2x1xf32, #tpu.memory_space<vmem>>, vector<2x1xf32>
      tpu.vector_store %arg9[%c0_24, %c0_25], %23 {strides = array<i32>} : memref<2x1xf32, #tpu.memory_space<vmem>>, vector<2x1xf32>,
      %cst_26 = arith.constant dense<0.000000e+00> : vector<2xf32>
      %25 = vector.multi_reduction <add>, %0, %cst_26 [1] : vector<2x16xf32> to vector<2xf32>
      %26 = vector.shape_cast %25 : vector<2xf32> to vector<2x1xf32>
      %c0_27 = arith.constant 0 : index
      %c0_28 = arith.constant 0 : index
      %27 = vector.load %arg10[%c0_27, %c0_28] : memref<2x1xf32, #tpu.memory_space<vmem>>, vector<2x1xf32>
      tpu.vector_store %arg10[%c0_27, %c0_28], %26 {strides = array<i32>} : memref<2x1xf32, #tpu.memory_space<vmem>>, vector<2x1xf32>,
    } else {
    }
    %c0_12 = arith.constant 0 : index
    %c0_13 = arith.constant 0 : index
    %12 = vector.load %arg8[%c0_12, %c0_13] : memref<2x1xf32, #tpu.memory_space<vmem>>, vector<2x1xf32>
    %13 = arith.addf %12, %8 : vector<2x1xf32>
    %c0_14 = arith.constant 0 : index
    %c0_15 = arith.constant 0 : index
    %14 = vector.load %arg8[%c0_14, %c0_15] : memref<2x1xf32, #tpu.memory_space<vmem>>, vector<2x1xf32>
    tpu.vector_store %arg8[%c0_14, %c0_15], %13 {strides = array<i32>} : memref<2x1xf32, #tpu.memory_space<vmem>>, vector<2x1xf32>,
    return
  }
  func.func @transform_0(%arg0: i32, %arg1: i32) -> (i32, i32, i32) {
    %c0_i32 = arith.constant 0 : i32
    %c0_i32_0 = arith.constant 0 : i32
    return %arg0, %arg1, %c0_i32 : i32, i32, i32
  }
  func.func @transform_1(%arg0: i32, %arg1: i32) -> (i32, i32, i32) {
    %c0_i32 = arith.constant 0 : i32
    %c0_i32_0 = arith.constant 0 : i32
    return %arg0, %arg1, %c0_i32 : i32, i32, i32
  }
  func.func @transform_2(%arg0: i32, %arg1: i32) -> (i32, i32) {
    %c0_i32 = arith.constant 0 : i32
    %c0_i32_0 = arith.constant 0 : i32
    return %arg0, %c0_i32 : i32, i32
  }
  func.func @transform_3(%arg0: i32, %arg1: i32) -> (i32, i32) {
    %c0_i32 = arith.constant 0 : i32
    %c0_i32_0 = arith.constant 0 : i32
    return %arg0, %c0_i32 : i32, i32
  }
  func.func @transform_4(%arg0: i32, %arg1: i32) -> (i32, i32) {
    %c0_i32 = arith.constant 0 : i32
    %c0_i32_0 = arith.constant 0 : i32
    return %arg0, %c0_i32 : i32, i32
  }
  func.func @transform_5(%arg0: i32, %arg1: i32) -> (i32, i32, i32) {
    %c0_i32 = arith.constant 0 : i32
    %c0_i32_0 = arith.constant 0 : i32
    %c0_i32_1 = arith.constant 0 : i32
    return %arg0, %c0_i32, %c0_i32_0 : i32, i32, i32
  }
  func.func @transform_6(%arg0: i32, %arg1: i32) -> (i32, i32) {
    %c0_i32 = arith.constant 0 : i32
    %c0_i32_0 = arith.constant 0 : i32
    return %arg0, %c0_i32 : i32, i32
  }
  func.func @transform_7(%arg0: i32, %arg1: i32) -> (i32, i32) {
    %c0_i32 = arith.constant 0 : i32
    %c0_i32_0 = arith.constant 0 : i32
    return %arg0, %c0_i32 : i32, i32
  }
  func.func @transform_8(%arg0: i32, %arg1: i32) -> (i32, i32) {
    %c0_i32 = arith.constant 0 : i32
    %c0_i32_0 = arith.constant 0 : i32
    return %arg0, %c0_i32 : i32, i32
  }
}

</mosaic_0001>

<llo_original>
// kernel: tpu_custom_call.1
$region0: #{tpu_custom_call.1}
  #allocation0 [shape = 'u32[]', space=smem, size = 0x4, offset = 0x4, fixed_abs, tag = 'smem constant byte address 0x4 - core index']
  #allocation1 [shape = 'u32[144,128]{1,0:T(1,128)}', space=vmem, size = 0x12000, scoped, tag = 'internal scratch']
  %s0 = inlined_call_operand.vmem [shape: f32[2,16,16], index: 0, kind: input, shape index: {}]
  %s1 = inlined_call_operand.hbm [shape: f32[2,16,16], index: 1, kind: input, shape index: {}]
  %s2 = inlined_call_operand.vmem [shape: f32[2,16], index: 2, kind: input, shape index: {}]
  %s3 = inlined_call_operand.vmem [shape: f32[2,16], index: 3, kind: input, shape index: {}]
  %s4 = inlined_call_operand.vmem [shape: f32[2,16], index: 4, kind: input, shape index: {}]
  %s5 = inlined_call_operand.vmem [shape: f32[2,16,1], index: 5, kind: input, shape index: {}]
  %s6 = inlined_call_operand.vmem [shape: f32[2,1], index: 6, kind: output, shape index: {0}]
  %s7 = inlined_call_operand.vmem [shape: f32[2,1], index: 7, kind: output, shape index: {1}]
  %s8 = inlined_call_operand.vmem [shape: f32[2,1], index: 8, kind: output, shape index: {2}]
  %9 = xla_tuple %s6, %s7, %s8
  %s10 = sld [smem:[#allocation0]]
  $region58: #{tpu_custom_call.1} parent=0
    _
  %s12 = ssub.s32 1, %s10
  %s13 = scalar_select 0, %s12, %s10
  $region1: #{tpu_custom_call.1} parent=0
    #allocation2 [shape = 'u8[16384]{0}', space=vmem, size = 0x4000, scoped, tag = 'input window, operand 1, single buffered']
    #allocation3 [shape = 's32[1]{0}', space=sflag, size = 0x4, scoped, tag = 'scoped memory for tpu_custom_call.1']
    %14 = vsyncpa [#allocation3], 0
    // Predicated region
    $region2: #{tpu_custom_call.1} parent=1 // pred_check
      _
    $region3: #{tpu_custom_call.1} parent=1 // pred_check_branch
      %16 = sbr.rel (0) target = $region5
    $region4: #{tpu_custom_call.1} parent=1 // pred_region
      _
    $region5: #{tpu_custom_call.1} parent=1 // pred_fallthru
      _
    // Predicated region
    $region6: #{tpu_custom_call.1} parent=1 // pred_check
      _
    $region7: #{tpu_custom_call.1} parent=1 // pred_check_branch
      %18 = sbr.rel (0) target = $region9
    $region8: #{tpu_custom_call.1} parent=1 // pred_region
      %s20 = ssub.s32 512, 512
      %21 = vsyncadd [#allocation3], %s20
      %s22 = sshll.u32 [#allocation2], 4
      %s23 = int_to_ptr.vmem [resolvable:$true] %s22
      %28 = dma.hbm_to_vmem [thread:$0]  %s1, 512, %s23, [#allocation3], 128, 128, 8
    $region9: #{tpu_custom_call.1} parent=1 // pred_fallthru
      _
    // Predicated region
    $region10: #{tpu_custom_call.1} parent=1 // pred_check
      _
    $region11: #{tpu_custom_call.1} parent=1 // pred_check_branch
      %30 = sbr.rel (0) target = $region13
    $region12: #{tpu_custom_call.1} parent=1 // pred_region
      _
    $region13: #{tpu_custom_call.1} parent=1 // pred_fallthru
      _
    // Predicated region
    $region14: #{tpu_custom_call.1} parent=1 // pred_check
      _
    $region15: #{tpu_custom_call.1} parent=1 // pred_check_branch
      %32 = sbr.rel (0) target = $region17
    $region16: #{tpu_custom_call.1} parent=1 // pred_region
      _
    $region17: #{tpu_custom_call.1} parent=1 // pred_fallthru
      _
    // Predicated region
    $region18: #{tpu_custom_call.1} parent=1 // pred_check
      _
    $region19: #{tpu_custom_call.1} parent=1 // pred_check_branch
      %34 = sbr.rel (0) target = $region21
    $region20: #{tpu_custom_call.1} parent=1 // pred_region
      _
    $region21: #{tpu_custom_call.1} parent=1 // pred_fallthru
      _
    // Predicated region
    $region22: #{tpu_custom_call.1} parent=1 // pred_check
      _
    $region23: #{tpu_custom_call.1} parent=1 // pred_check_branch
      %36 = sbr.rel (0) target = $region25
    $region24: #{tpu_custom_call.1} parent=1 // pred_region
      _
    $region25: #{tpu_custom_call.1} parent=1 // pred_fallthru
      _
    // Predicated region
    $region26: #{tpu_custom_call.1} parent=1 // pred_check
      _
    $region27: #{tpu_custom_call.1} parent=1 // pred_check_branch
      %38 = sbr.rel (0) target = $region29
    $region28: #{tpu_custom_call.1} parent=1 // pred_region
      %39 = dma.done [#allocation3], 512
    $region29: #{tpu_custom_call.1} parent=1 // pred_fallthru
      _
    %v40 = vld [vmem:[%s4] sm:$0x3]
    %v41 = vld [vmem:[%s5] sm:$0xff]
    %v42 = vld [vmem:[%s5 + $0x8] sm:$0xff]
    %v43 = vld [vmem:[%s5 + $0x10] sm:$0xff]
    %v44 = vld [vmem:[%s5 + $0x18] sm:$0xff]
    %v45 = vld [vmem:[%s0] sm:$0xff]
    %v46 = vld [vmem:[%s0 + $0x8] sm:$0xff]
    %v47 = vld [vmem:[%s0 + $0x10] sm:$0xff]
    %v48 = vld [vmem:[%s0 + $0x18] sm:$0xff]
    %v49 = vld [vmem:[#allocation2] sm:$0xff]
    %v50 = vld [vmem:[#allocation2 + $0x8] sm:$0xff]
    %v51 = vld [vmem:[#allocation2 + $0x10] sm:$0xff]
    %v52 = vld [vmem:[#allocation2 + $0x18] sm:$0xff]
    %v53 = vsub.f32 %v45, %v49
    %v54 = vsub.f32 %v46, %v50
    %v55 = vsub.f32 %v47, %v51
    %v56 = vsub.f32 %v48, %v52
    %v57 = vmul.f32 %v53, %v53
    %v58 = vmul.f32 %v54, %v54
    %v59 = vmul.f32 %v55, %v55
    %v60 = vmul.f32 %v56, %v56
    %vm61 = vcmask 130048
    %v63 = vsel %vm61, %v57, 0
    %v66 = vsel %vm61, %v58, 0
    %68 = vmatprep.subr.mxu0 0.0
    %69 = vmatpush1.msra.mxu0 0.0
    %70 = vmatprep.subr.mxu0 0.0
    %71 = vmatpush1.msra.mxu0 0.0
    %72 = vmatprep.subr.mxu0 0.0
    %73 = vmatpush1.msra.mxu0 0.0
    %74 = vmatprep.subr.mxu0 0.0
    %75 = vmatpush1.msra.mxu0 0.0
    %76 = vmatprep.subr.mxu0 0.0
    %77 = vmatpush1.msra.mxu0 0.0
    %78 = vmatprep.subr.mxu0 0.0
    %79 = vmatpush1.msra.mxu0 0.0
    %80 = vmatprep.subr.mxu0 0.0
    %81 = vmatpush1.msra.mxu0 0.0
    %82 = vmatprep.subr.mxu0 0.0
    %83 = vmatpush1.msra.mxu0 0.0
    %84 = vmatprep.subr.mxu0 0.0
    %85 = vmatpush1.msra.mxu0 0.0
    %86 = vmatprep.subr.mxu0 0.0
    %87 = vmatpush1.msra.mxu0 0.0
    %88 = vmatprep.subr.mxu0 0.0
    %89 = vmatpush1.msra.mxu0 0.0
    %90 = vmatprep.subr.mxu0 0.0
    %91 = vmatpush1.msra.mxu0 0.0
    %92 = vmatprep.subr.mxu0 0.0
    %93 = vmatpush1.msra.mxu0 0.0
    %94 = vmatprep.subr.mxu0 0.0
    %95 = vmatpush1.msra.mxu0 0.0
    %96 = vmatprep.subr.mxu0 0.0
    %97 = vmatpush1.msra.mxu0 %v42
    %98 = vmatprep.subr.mxu0 0.0
    %99 = vmatpush1.msra.mxu0 %v41
    %100 = vmatprep.subr.mxu0 0.0
    %101 = vmatpush2.msra.mxu0 0.0
    %102 = vmatprep.subr.mxu0 0.0
    %103 = vmatpush2.msra.mxu0 0.0
    %104 = vmatprep.subr.mxu0 0.0
    %105 = vmatpush2.msra.mxu0 0.0
    %106 = vmatprep.subr.mxu0 0.0
    %107 = vmatpush2.msra.mxu0 0.0
    %108 = vmatprep.subr.mxu0 0.0
    %109 = vmatpush2.msra.mxu0 0.0
    %110 = vmatprep.subr.mxu0 0.0
    %111 = vmatpush2.msra.mxu0 0.0
    %112 = vmatprep.subr.mxu0 0.0
    %113 = vmatpush2.msra.mxu0 0.0
    %114 = vmatprep.subr.mxu0 0.0
    %115 = vmatpush2.msra.mxu0 0.0
    %116 = vmatprep.subr.mxu0 0.0
    %117 = vmatpush2.msra.mxu0 0.0
    %118 = vmatprep.subr.mxu0 0.0
    %119 = vmatpush2.msra.mxu0 0.0
    %120 = vmatprep.subr.mxu0 0.0
    %121 = vmatpush2.msra.mxu0 0.0
    %122 = vmatprep.subr.mxu0 0.0
    %123 = vmatpush2.msra.mxu0 0.0
    %124 = vmatprep.subr.mxu0 0.0
    %125 = vmatpush2.msra.mxu0 0.0
    %126 = vmatprep.subr.mxu0 0.0
    %127 = vmatpush2.msra.mxu0 0.0
    %128 = vmatprep.subr.mxu0 0.0
    %129 = vmatpush2.msra.mxu0 0.0
    %130 = vmatprep.subr.mxu0 0.0
    %131 = vmatpush2.msra.mxu0 0.0
    %132 = vmatprep.mubr.f32.mxu0 0.0
    %133 = vmatmul.mubr.f32.gmra.mxu0 %v63
    %v134 = vpop.f32.mrf.mxu0
    %v135 = vadd.f32 0.0, %v134
    %v136 = vpop.f32.mrf.mxu0
    %137 = vmatprep.mubr.f32.mxu0 0.0
    %138 = vmatmul.mubr.f32.gmra.mxu0 %v66
    %v139 = vpop.f32.mrf.mxu0
    %v140 = vadd.f32 0.0, %v139
    %v141 = vpop.f32.mrf.mxu0
    %142 = vdwg.mxu0
    %v144 = vsel %vm61, %v59, 0
    %v147 = vsel %vm61, %v60, 0
    %149 = vmatprep.subr.mxu0 0.0
    %150 = vmatpush1.msra.mxu0 0.0
    %151 = vmatprep.subr.mxu0 0.0
    %152 = vmatpush1.msra.mxu0 0.0
    %153 = vmatprep.subr.mxu0 0.0
    %154 = vmatpush1.msra.mxu0 0.0
    %155 = vmatprep.subr.mxu0 0.0
    %156 = vmatpush1.msra.mxu0 0.0
    %157 = vmatprep.subr.mxu0 0.0
    %158 = vmatpush1.msra.mxu0 0.0
    %159 = vmatprep.subr.mxu0 0.0
    %160 = vmatpush1.msra.mxu0 0.0
    %161 = vmatprep.subr.mxu0 0.0
    %162 = vmatpush1.msra.mxu0 0.0
    %163 = vmatprep.subr.mxu0 0.0
    %164 = vmatpush1.msra.mxu0 0.0
    %165 = vmatprep.subr.mxu0 0.0
    %166 = vmatpush1.msra.mxu0 0.0
    %167 = vmatprep.subr.mxu0 0.0
    %168 = vmatpush1.msra.mxu0 0.0
    %169 = vmatprep.subr.mxu0 0.0
    %170 = vmatpush1.msra.mxu0 0.0
    %171 = vmatprep.subr.mxu0 0.0
    %172 = vmatpush1.msra.mxu0 0.0
    %173 = vmatprep.subr.mxu0 0.0
    %174 = vmatpush1.msra.mxu0 0.0
    %175 = vmatprep.subr.mxu0 0.0
    %176 = vmatpush1.msra.mxu0 0.0
    %177 = vmatprep.subr.mxu0 0.0
    %178 = vmatpush1.msra.mxu0 %v44
    %179 = vmatprep.subr.mxu0 0.0
    %180 = vmatpush1.msra.mxu0 %v43
    %181 = vmatprep.subr.mxu0 0.0
    %182 = vmatpush2.msra.mxu0 0.0
    %183 = vmatprep.subr.mxu0 0.0
    %184 = vmatpush2.msra.mxu0 0.0
    %185 = vmatprep.subr.mxu0 0.0
    %186 = vmatpush2.msra.mxu0 0.0
    %187 = vmatprep.subr.mxu0 0.0
    %188 = vmatpush2.msra.mxu0 0.0
    %189 = vmatprep.subr.mxu0 0.0
    %190 = vmatpush2.msra.mxu0 0.0
    %191 = vmatprep.subr.mxu0 0.0
    %192 = vmatpush2.msra.mxu0 0.0
    %193 = vmatprep.subr.mxu0 0.0
    %194 = vmatpush2.msra.mxu0 0.0
    %195 = vmatprep.subr.mxu0 0.0
    %196 = vmatpush2.msra.mxu0 0.0
    %197 = vmatprep.subr.mxu0 0.0
    %198 = vmatpush2.msra.mxu0 0.0
    %199 = vmatprep.subr.mxu0 0.0
    %200 = vmatpush2.msra.mxu0 0.0
    %201 = vmatprep.subr.mxu0 0.0
    %202 = vmatpush2.msra.mxu0 0.0
    %203 = vmatprep.subr.mxu0 0.0
    %204 = vmatpush2.msra.mxu0 0.0
    %205 = vmatprep.subr.mxu0 0.0
    %206 = vmatpush2.msra.mxu0 0.0
    %207 = vmatprep.subr.mxu0 0.0
    %208 = vmatpush2.msra.mxu0 0.0
    %209 = vmatprep.subr.mxu0 0.0
    %210 = vmatpush2.msra.mxu0 0.0
    %211 = vmatprep.subr.mxu0 0.0
    %212 = vmatpush2.msra.mxu0 0.0
    %213 = vmatprep.mubr.f32.mxu0 0.0
    %214 = vmatmul.mubr.f32.gmra.mxu0 %v144
    %v215 = vpop.f32.mrf.mxu0
    %v216 = vadd.f32 0.0, %v215
    %v217 = vpop.f32.mrf.mxu0
    %218 = vmatprep.mubr.f32.mxu0 0.0
    %219 = vmatmul.mubr.f32.gmra.mxu0 %v147
    %v220 = vpop.f32.mrf.mxu0
    %v221 = vadd.f32 0.0, %v220
    %v222 = vpop.f32.mrf.mxu0
    %223 = vdwg.mxu0
    %v224 = vmul.f32 %v135, %v41
    %v225 = vmul.f32 %v140, %v42
    %v226 = vmul.f32 %v216, %v43
    %v227 = vmul.f32 %v221, %v44
    %vm228 = vcmask 7168
    %v229 = vsel %vm228, %v224, 0.0
    %v230 = vsel %vm228, %v225, 0.0
    %v231 = vadd.f32 %v229, %v230
    %v232 = vrot.slane %v231, 4
    %v233 = vadd.f32 %v231, %v232
    %v234 = vrot.slane %v233, 2
    %v235 = vadd.f32 %v233, %v234
    %v236 = vrot.slane %v235, 1
    %v237 = vadd.f32 %v235, %v236
    %v238 = vsel %vm228, %v226, 0.0
    %v239 = vsel %vm228, %v227, 0.0
    %v240 = vadd.f32 %v238, %v239
    %v241 = vrot.slane %v240, 4
    %v242 = vadd.f32 %v240, %v241
    %v243 = vrot.slane %v242, 2
    %v244 = vadd.f32 %v242, %v243
    %v245 = vrot.slane %v244, 1
    %v246 = vadd.f32 %v244, %v245
    %p247 = scmp.eq.s32.totalorder 0, 0
    // Predicated region
    $region30: #{tpu_custom_call.1} parent=1 // pred_check
      %p248 = pneg %p247
    $region31: #{tpu_custom_call.1} parent=1 // pred_check_branch
      %250 = sbr.rel (%p248) target = $region33
    $region32: #{tpu_custom_call.1} parent=1 // pred_region
      %vm251 = vcmask 1024
      %252 = vst.msk [vmem:[%s6] sm:$0x3] %vm251, 0.0
      %v253 = vld [vmem:[%s2] sm:$0x3]
      %v254 = vld [vmem:[%s3] sm:$0x3]
      %v255 = vsub.f32 %v253, %v254
      %v256 = vmul.f32 %v255, %v255
      %v257 = vmul.f32 %v256, %v40
      %vm258 = vcmask 123904
      %v259 = vsel %vm258, %v257, 0.0
      %260 = vadd.xlane.f32.xlu0 %v259
      %v261 = vpop.xlane.xlu0 %260
      %262 = vst.msk [vmem:[%s7] sm:$0x3] %vm251, %v261
      %v263 = vsel %vm258, %v40, 0.0
      %264 = vadd.xlane.f32.xlu0 %v263
      %v265 = vpop.xlane.xlu0 %264
      %266 = vst.msk [vmem:[%s8] sm:$0x3] %vm251, %v265
    $region33: #{tpu_custom_call.1} parent=1 // pred_fallthru
      _
    %v267 = vld [vmem:[%s6] sm:$0x3]
    %vm270 = vcmask 1041409
    %v271 = vsel %vm270, %v246, %v237
    %v273 = vadd.f32 %v267, %v271
    %vm274 = vcmask 1024
    %275 = vst.msk [vmem:[%s6] sm:$0x3] %vm274, %v273
    // Predicated region
    $region34: #{tpu_custom_call.1} parent=1 // pred_check
      _
    $region35: #{tpu_custom_call.1} parent=1 // pred_check_branch
      %277 = sbr.rel (0) target = $region37
    $region36: #{tpu_custom_call.1} parent=1 // pred_region
      _
    $region37: #{tpu_custom_call.1} parent=1 // pred_fallthru
      _
    // Predicated region
    $region38: #{tpu_custom_call.1} parent=1 // pred_check
      _
    $region39: #{tpu_custom_call.1} parent=1 // pred_check_branch
      %279 = sbr.rel (0) target = $region41
    $region40: #{tpu_custom_call.1} parent=1 // pred_region
      _
    $region41: #{tpu_custom_call.1} parent=1 // pred_fallthru
      _
    // Predicated region
    $region42: #{tpu_custom_call.1} parent=1 // pred_check
      _
    $region43: #{tpu_custom_call.1} parent=1 // pred_check_branch
      %281 = sbr.rel (0) target = $region45
    $region44: #{tpu_custom_call.1} parent=1 // pred_region
      _
    $region45: #{tpu_custom_call.1} parent=1 // pred_fallthru
      _
    // Predicated region
    $region46: #{tpu_custom_call.1} parent=1 // pred_check
      _
    $region47: #{tpu_custom_call.1} parent=1 // pred_check_branch
      %283 = sbr.rel (0) target = $region49
    $region48: #{tpu_custom_call.1} parent=1 // pred_region
      _
    $region49: #{tpu_custom_call.1} parent=1 // pred_fallthru
      _
    // Predicated region
    $region50: #{tpu_custom_call.1} parent=1 // pred_check
      _
    $region51: #{tpu_custom_call.1} parent=1 // pred_check_branch
      %285 = sbr.rel (0) target = $region53
    $region52: #{tpu_custom_call.1} parent=1 // pred_region
      _
    $region53: #{tpu_custom_call.1} parent=1 // pred_fallthru
      _
    // Predicated region
    $region54: #{tpu_custom_call.1} parent=1 // pred_check
      _
    $region55: #{tpu_custom_call.1} parent=1 // pred_check_branch
      %287 = sbr.rel (0) target = $region57
    $region56: #{tpu_custom_call.1} parent=1 // pred_region
      _
    $region57: #{tpu_custom_call.1} parent=1 // pred_fallthru
      _
    %288 = vsyncpa [#allocation3], 1

</llo_original>
